<compile_context>
chip_gen: v5e
topology: v5e:2x2
jax: 0.10.0
libtpu: 0.0.40
codegen_flags: <defaults>
</compile_context>

<pallas_src>
import functools

import numpy as np
import jax
import jax.numpy as jnp
from jax.experimental import pallas as pl
from jax.experimental.pallas import tpu as pltpu


# ----------------------------------------------------------------------------
# PixelCNN mask (static numpy so zero taps can be skipped at trace time)
# ----------------------------------------------------------------------------
def make_mask(conv_type, KH, KW):
    assert conv_type in ("A", "B")
    mask = np.zeros((KH, KW), dtype=np.float32)
    mask[0:KH // 2] = 1.0
    mask[KH // 2, 0:KW // 2] = 1.0
    if conv_type == "B":
        mask[KH // 2, KW // 2] = 1.0
    return mask


# ----------------------------------------------------------------------------
# Pallas kernel: one aligned (Cout, Kc) @ (Kc, m_ext) dot per image + bias
# ----------------------------------------------------------------------------
def _masked_conv_kernel(x_ref, w_ref, b_ref, o_ref):
    # x_ref: (nb, Kc, m_ext)   bf16  tap-stacked activation columns per image
    # w_ref: (Cout, Kc)        bf16  folded weights (mask!=0 taps only)
    # b_ref: (Cout, 1)         f32
    # o_ref: (nb, Cout, m_ext) f32   lane-dense (m_ext % 128 == 0) flat output
    w = w_ref[...]
    b = b_ref[...]
    for i in range(x_ref.shape[0]):        # static unroll; nb is 1 or small
        acc = jnp.dot(w, x_ref[i], preferred_element_type=jnp.float32)
        o_ref[i] = (acc + b).astype(o_ref.dtype)


# ----------------------------------------------------------------------------
# Grid-step sizing: 1 step on single-TC chips, num_cores steps on v7x,
# bounded by a conservative VMEM budget (sized against v7x).
# ----------------------------------------------------------------------------
def _pick_images_per_step(N, per_image_bytes):
    try:
        kind = jax.devices()[0].device_kind.lower()
    except Exception:  # pragma: no cover - defensive
        kind = ""
    n_cores = 2 if "v7" in kind else 1       # v7x: 2 TensorCores; v5e/v6e: 1
    if n_cores > 1 and N >= n_cores and N % n_cores == 0:
        nb = N // n_cores                    # one parallel grid step per core
    else:
        nb = N                               # single step: no per-step overhead
    budget = 8 * 1024 * 1024                 # well under 32 MiB scoped VMEM (v7x)
    while nb > 1 and 2 * nb * per_image_bytes > budget:   # 2x: double buffering
        nb -= 1
        while nb > 1 and N % nb != 0:        # keep nb a divisor of N
            nb -= 1
    return nb


# ----------------------------------------------------------------------------
# MaskConv2d forward (NCHW in, NCHW out — same as the PyTorch module)
# ----------------------------------------------------------------------------
@functools.partial(jax.jit, static_argnames=("conv_type", "padding", "stride"))
def mask_conv2d_forward(x, weight, bias, *, conv_type="B", padding=1, stride=1):
    """x: (N, Cin, H, W) f32; weight: (Cout, Cin, KH, KW); bias: (Cout,)."""
    assert stride == 1, "stride=1 only for this kernel"
    N, Cin, H, W = x.shape
    Cout, _, KH, KW = weight.shape
    # 'same' convolution, as in the reference module (kernel 3, padding 1).
    assert H + 2 * padding - KH + 1 == H and W + 2 * padding - KW + 1 == W

    mask_np = make_mask(conv_type, KH, KW)
    taps = [(kh, kw) for kh in range(KH) for kw in range(KW)
            if mask_np[kh, kw] != 0.0]
    n_taps = len(taps)
    Kc = n_taps * Cin                        # folded contraction dim (5*4 = 20)

    # Padded width rounded up so m_ext = H*Wp is a multiple of 128 (lane-dense,
    # unmasked stores).  Extra right-pad columns are zero; extended output
    # columns are garbage and are sliced off at the end.
    Wp = W + 2 * padding
    while (H * Wp) % 128 != 0:
        Wp += 1
    Hp = H + 2 * padding + 1                 # +1 zero row keeps tap slices in-bounds
    L = Hp * Wp
    m_ext = H * Wp

    # Pad ONCE (no KH*KW im2col blow-up of the full kernel), flatten spatially,
    # then pre-stack only the mask!=0 tap windows along the channel axis so the
    # kernel does a single aligned dot with K = n_taps*Cin.
    xp = jnp.pad(x, ((0, 0), (0, 0),
                     (padding, Hp - H - padding),
                     (padding, Wp - W - padding)))
    x_flat = xp.reshape(N, Cin, L)
    x_taps = jnp.concatenate(
        [x_flat[:, :, kh * Wp + kw: kh * Wp + kw + m_ext] for (kh, kw) in taps],
        axis=1).astype(jnp.bfloat16)                          # (N, Kc, m_ext)

    w_folded = jnp.concatenate(
        [weight[:, :, kh, kw] for (kh, kw) in taps], axis=1
    ).astype(jnp.bfloat16)                                    # (Cout, Kc)
    bias2d = bias.reshape(Cout, 1).astype(jnp.float32)

    per_image_bytes = Kc * m_ext * 2 + Cout * m_ext * 4       # bf16 in + f32 out
    nb = _pick_images_per_step(N, per_image_bytes)
    num_steps = N // nb

    flops = 2 * N * Cout * Kc * m_ext
    bytes_accessed = (x_taps.size * 2 + w_folded.size * 2
                      + bias2d.size * 4 + N * Cout * m_ext * 4)

    out_ext = pl.pallas_call(
        _masked_conv_kernel,
        out_shape=jax.ShapeDtypeStruct((N, Cout, m_ext), jnp.float32),
        grid_spec=pltpu.PrefetchScalarGridSpec(
            num_scalar_prefetch=0,
            grid=(num_steps,),
            in_specs=[
                pl.BlockSpec((nb, Kc, m_ext), lambda n: (n, 0, 0)),
                pl.BlockSpec((Cout, Kc), lambda n: (0, 0)),
                pl.BlockSpec((Cout, 1), lambda n: (0, 0)),
            ],
            out_specs=pl.BlockSpec((nb, Cout, m_ext), lambda n: (n, 0, 0)),
        ),
        compiler_params=pltpu.CompilerParams(
            dimension_semantics=("parallel",),
            # Allow XLA to fuse the wrapper-side pad/slice/bf16-convert into the
            # activation operand instead of an extra HBM round trip.
            allow_input_fusion=[True, False, False],
            vmem_limit_bytes=32 * 1024 * 1024,
        ),
        cost_estimate=pl.CostEstimate(
            flops=flops, transcendentals=0, bytes_accessed=bytes_accessed),
    )(x_taps, w_folded, bias2d)

    # Keep only the valid W columns of each extended row; result is already
    # NCHW (no layout transpose anywhere).
    out = out_ext.reshape(N, Cout, H, Wp)[:, :, :, :W]
    return out


# ----------------------------------------------------------------------------
# Reference (pure JAX, f32) for correctness verification
# ----------------------------------------------------------------------------
def mask_conv2d_reference(x, weight, bias, *, conv_type="B", padding=1):
    KH, KW = weight.shape[-2:]
    mask = jnp.asarray(make_mask(conv_type, KH, KW))
    w_masked = weight * mask[None, None, :, :]
    out = jax.lax.conv_general_dilated(
        x, w_masked,
        window_strides=(1, 1),
        padding=((padding, padding), (padding, padding)),
        dimension_numbers=("NCHW", "OIHW", "NCHW"),
    )
    return out + bias[None, :, None, None]


# ----------------------------------------------------------------------------
# Main
# ----------------------------------------------------------------------------
if __name__ == "__main__":
    # Module equivalent: MaskConv2d('B', in_channels=4, out_channels=8,
    #                               kernel_size=3, padding=1)
    conv_type = "B"
    N, Cin, H, W = 2, 4, 16, 16
    Cout, KH, KW = 8, 3, 3
    padding = 1

    key = jax.random.PRNGKey(0)
    kx, kwgt, kb = jax.random.split(key, 3)

    x = jax.random.normal(kx, (N, Cin, H, W), dtype=jnp.float32)
    fan_in = Cin * KH * KW
    bound = 1.0 / float(np.sqrt(fan_in))
    weight = jax.random.uniform(kwgt, (Cout, Cin, KH, KW), jnp.float32, -bound, bound)
    bias = jax.random.uniform(kb, (Cout,), jnp.float32, -bound, bound)

    out = mask_conv2d_forward(x, weight, bias, conv_type=conv_type, padding=padding)
    out = jax.block_until_ready(out)

    ref = mask_conv2d_reference(x, weight, bias, conv_type=conv_type, padding=padding)
    assert out.shape == (N, Cout, H, W), out.shape
    # bf16 MXU inputs with f32 accumulation -> slightly looser tolerance vs f32 ref.
    assert jnp.allclose(out, ref, atol=2e-2, rtol=2e-2), "mismatch vs reference conv"

    print("KERNEL_OK")
</pallas_src>

<mosaic_0001>
module attributes {stable_mosaic.version = 11 : i64} {
  func.func @_masked_conv_kernel(%arg0: i32, %arg1: memref<2x20x384xbf16, #tpu.memory_space<vmem>>, %arg2: memref<8x20xbf16, #tpu.memory_space<vmem>>, %arg3: memref<8x1xf32, #tpu.memory_space<vmem>>, %arg4: memref<2x8x384xf32, #tpu.memory_space<vmem>>) attributes {dimension_semantics = [#tpu.dimension_semantics<parallel>], iteration_bounds = array<i64: 1>, scalar_prefetch = 0 : i64, scratch_operands = 0 : i64, tpu.core_type = #tpu.core_type<tc>, window_params = [{transform_indices = @transform_0, window_bounds = array<i64: 2, 20, 384>}, {pipeline_mode = #tpu.pipeline_mode<synchronous>, transform_indices = @transform_1, window_bounds = array<i64: 8, 20>}, {pipeline_mode = #tpu.pipeline_mode<synchronous>, transform_indices = @transform_2, window_bounds = array<i64: 8, 1>}, {transform_indices = @transform_3, window_bounds = array<i64: 2, 8, 384>}]} {
    %c0 = arith.constant 0 : index
    %c0_0 = arith.constant 0 : index
    %0 = vector.load %arg2[%c0, %c0_0] : memref<8x20xbf16, #tpu.memory_space<vmem>>, vector<8x20xbf16>
    %c0_1 = arith.constant 0 : index
    %c0_2 = arith.constant 0 : index
    %1 = vector.load %arg3[%c0_1, %c0_2] : memref<8x1xf32, #tpu.memory_space<vmem>>, vector<8x1xf32>
    %c0_3 = arith.constant 0 : index
    %c0_4 = arith.constant 0 : index
    %c0_5 = arith.constant 0 : index
    %2 = vector.load %arg1[%c0_3, %c0_4, %c0_5] : memref<2x20x384xbf16, #tpu.memory_space<vmem>>, vector<1x20x384xbf16>
    %3 = vector.shape_cast %2 : vector<1x20x384xbf16> to vector<20x384xbf16>
    %cst = arith.constant dense<0.000000e+00> : vector<8x384xf32>
    %4 = tpu.matmul %0, %3, %cst {dimension_numbers = #tpu.dot_dimension_numbers<[1], [0], [0], [1], [0, 0, 1, 1], [], []>} : vector<8x20xbf16>, vector<20x384xbf16>, vector<8x384xf32> -> vector<8x384xf32>
    %5 = vector.broadcast %1 : vector<8x1xf32> to vector<8x384xf32>
    %6 = arith.addf %4, %5 : vector<8x384xf32>
    %c0_6 = arith.constant 0 : index
    %c0_7 = arith.constant 0 : index
    %c0_8 = arith.constant 0 : index
    %7 = vector.load %arg4[%c0_6, %c0_7, %c0_8] : memref<2x8x384xf32, #tpu.memory_space<vmem>>, vector<1x8x384xf32>
    %8 = vector.shape_cast %7 : vector<1x8x384xf32> to vector<8x384xf32>
    %9 = vector.shape_cast %6 : vector<8x384xf32> to vector<1x8x384xf32>
    tpu.vector_store %arg4[%c0_6, %c0_7, %c0_8], %9 {strides = array<i32>} : memref<2x8x384xf32, #tpu.memory_space<vmem>>, vector<1x8x384xf32>,
    %c1 = arith.constant 1 : index
    %c0_9 = arith.constant 0 : index
    %c0_10 = arith.constant 0 : index
    %10 = vector.load %arg1[%c1, %c0_9, %c0_10] : memref<2x20x384xbf16, #tpu.memory_space<vmem>>, vector<1x20x384xbf16>
    %11 = vector.shape_cast %10 : vector<1x20x384xbf16> to vector<20x384xbf16>
    %cst_11 = arith.constant dense<0.000000e+00> : vector<8x384xf32>
    %12 = tpu.matmul %0, %11, %cst_11 {dimension_numbers = #tpu.dot_dimension_numbers<[1], [0], [0], [1], [0, 0, 1, 1], [], []>} : vector<8x20xbf16>, vector<20x384xbf16>, vector<8x384xf32> -> vector<8x384xf32>
    %13 = vector.broadcast %1 : vector<8x1xf32> to vector<8x384xf32>
    %14 = arith.addf %12, %13 : vector<8x384xf32>
    %c1_12 = arith.constant 1 : index
    %c0_13 = arith.constant 0 : index
    %c0_14 = arith.constant 0 : index
    %15 = vector.load %arg4[%c1_12, %c0_13, %c0_14] : memref<2x8x384xf32, #tpu.memory_space<vmem>>, vector<1x8x384xf32>
    %16 = vector.shape_cast %15 : vector<1x8x384xf32> to vector<8x384xf32>
    %17 = vector.shape_cast %14 : vector<8x384xf32> to vector<1x8x384xf32>
    tpu.vector_store %arg4[%c1_12, %c0_13, %c0_14], %17 {strides = array<i32>} : memref<2x8x384xf32, #tpu.memory_space<vmem>>, vector<1x8x384xf32>,
    return
  }
  func.func @transform_0(%arg0: i32) -> (i32, i32, i32) {
    %c0_i32 = arith.constant 0 : i32
    %c0_i32_0 = arith.constant 0 : i32
    %c0_i32_1 = arith.constant 0 : i32
    return %arg0, %c0_i32, %c0_i32_0 : i32, i32, i32
  }
  func.func @transform_1(%arg0: i32) -> (i32, i32) {
    %c0_i32 = arith.constant 0 : i32
    %c0_i32_0 = arith.constant 0 : i32
    %c0_i32_1 = arith.constant 0 : i32
    return %c0_i32, %c0_i32_0 : i32, i32
  }
  func.func @transform_2(%arg0: i32) -> (i32, i32) {
    %c0_i32 = arith.constant 0 : i32
    %c0_i32_0 = arith.constant 0 : i32
    %c0_i32_1 = arith.constant 0 : i32
    return %c0_i32, %c0_i32_0 : i32, i32
  }
  func.func @transform_3(%arg0: i32) -> (i32, i32, i32) {
    %c0_i32 = arith.constant 0 : i32
    %c0_i32_0 = arith.constant 0 : i32
    %c0_i32_1 = arith.constant 0 : i32
    return %arg0, %c0_i32, %c0_i32_0 : i32, i32, i32
  }
}

</mosaic_0001>

<llo_original>
// kernel: mask_conv2d_forward.1
$region0: #{mask_conv2d_forward.1}
  #allocation0 [shape = 'u32[]', space=smem, size = 0x4, offset = 0x4, fixed_abs, tag = 'smem constant byte address 0x4 - core index']
  #allocation1 [shape = 'u32[72,128]{1,0:T(1,128)}', space=vmem, size = 0x9000, scoped, tag = 'internal scratch']
  %s0 = inlined_call_operand.vmem [shape: bf16[2,20,384], index: 0, kind: input, shape index: {}]
  %s1 = inlined_call_operand.vmem [shape: bf16[8,20], index: 1, kind: input, shape index: {}]
  %s2 = inlined_call_operand.vmem [shape: f32[8,1], index: 2, kind: input, shape index: {}]
  %s3 = inlined_call_operand.vmem [shape: f32[2,8,384], index: 3, kind: output, shape index: {}]
  %s4 = sld [smem:[#allocation0]]
  $region22: #{mask_conv2d_forward.1} parent=0
    _
  %s6 = ssub.s32 1, %s4
  %s7 = scalar_select 0, %s6, %s4
  // Predicated region
  $region2: #{mask_conv2d_forward.1} parent=0 // pred_check
    _
  $region3: #{mask_conv2d_forward.1} parent=0 // pred_check_branch
    %9 = sbr.rel (0) target = $region5
  $region4: #{mask_conv2d_forward.1} parent=0 // pred_region
    _
  $region5: #{mask_conv2d_forward.1} parent=0 // pred_fallthru
    _
  // Predicated region
  $region6: #{mask_conv2d_forward.1} parent=0 // pred_check
    _
  $region7: #{mask_conv2d_forward.1} parent=0 // pred_check_branch
    %11 = sbr.rel (0) target = $region9
  $region8: #{mask_conv2d_forward.1} parent=0 // pred_region
    _
  $region9: #{mask_conv2d_forward.1} parent=0 // pred_fallthru
    _
  // Predicated region
  $region10: #{mask_conv2d_forward.1} parent=0 // pred_check
    _
  $region11: #{mask_conv2d_forward.1} parent=0 // pred_check_branch
    %13 = sbr.rel (0) target = $region13
  $region12: #{mask_conv2d_forward.1} parent=0 // pred_region
    _
  $region13: #{mask_conv2d_forward.1} parent=0 // pred_fallthru
    _
  %v15 = vld [vmem:[%s1] sm:$0xf]
  %v16 = vld [vmem:[%s2] sm:$0xff]
  %v17 = vld [vmem:[%s0] sm:$0xff]
  %v18 = vld [vmem:[%s0 + $0x8] sm:$0xf]
  %v19 = vld [vmem:[%s0 + $0xc] sm:$0xff]
  %v20 = vld [vmem:[%s0 + $0x14] sm:$0xf]
  %v21 = vld [vmem:[%s0 + $0x18] sm:$0x33]
  %v22 = vld [vmem:[%s0 + $0x20] sm:$0x3]
  %24 = vset.pattern.permute.xlu0 0
  %25 = vperm.xlu0 %24, %v16
  %v26 = vpop.permute.xlu0 %25
  %v34 = vunpack.c.l.b16 %v17
  %v35 = vunpack.c.h.b16 %v17
  %v36 = vunpack.c.l.b16 %v18
  %v37 = vunpack.c.l.b16 %v19
  %v38 = vunpack.c.h.b16 %v19
  %v39 = vunpack.c.l.b16 %v20
  %v40 = vunpack.c.l.b16 %v21
  %v41 = vunpack.c.h.b16 %v21
  %v42 = vunpack.c.l.b16 %v22
  %v43 = vpack.c.b16 %v37, %v34
  %v44 = vpack.c.b16 %v38, %v35
  %v45 = vpack.c.b16 %v39, %v36
  %v46 = vpack.c.b16 %v40, %v40
  %v47 = vpack.c.b16 %v41, %v41
  %v48 = vpack.c.b16 %v42, %v42
  %vm52 = vcmask 162816
  %v54 = vsel %vm52, %v15, 0
  %vm56 = vcmask 1041408
  %v58 = vsel %vm56, %v46, 0
  %v61 = vsel %vm56, %v47, 0
  %v64 = vsel %vm56, %v48, 0
  %66 = vmatpush.bf16.msra.mxu0 0
  %67 = vmatpush.bf16.msra.mxu0 0
  %68 = vmatpush.bf16.msra.mxu0 0
  %69 = vmatpush.bf16.msra.mxu0 0
  %70 = vmatpush.bf16.msra.mxu0 0
  %71 = vmatpush.bf16.msra.mxu0 0
  %72 = vmatpush.bf16.msra.mxu0 %v58
  %73 = vmatpush.bf16.msra.mxu0 %v43
  %74 = vmatmul.bf16.gmra.mxu0 %v54
  %v75 = vpop.f32.mrf.mxu0
  %v76 = vadd.f32 %v26, %v75
  %v77 = vpop.f32.mrf.mxu0
  %78 = vdwg.mxu0
  %79 = vmatpush.bf16.msra.mxu0 0
  %80 = vmatpush.bf16.msra.mxu0 0
  %81 = vmatpush.bf16.msra.mxu0 0
  %82 = vmatpush.bf16.msra.mxu0 0
  %83 = vmatpush.bf16.msra.mxu0 0
  %84 = vmatpush.bf16.msra.mxu0 0
  %85 = vmatpush.bf16.msra.mxu0 %v61
  %86 = vmatpush.bf16.msra.mxu0 %v44
  %87 = vmatmul.bf16.gmra.mxu0 %v54
  %v88 = vpop.f32.mrf.mxu0
  %v89 = vadd.f32 %v26, %v88
  %v90 = vpop.f32.mrf.mxu0
  %91 = vdwg.mxu0
  %92 = vmatpush.bf16.msra.mxu0 0
  %93 = vmatpush.bf16.msra.mxu0 0
  %94 = vmatpush.bf16.msra.mxu0 0
  %95 = vmatpush.bf16.msra.mxu0 0
  %96 = vmatpush.bf16.msra.mxu0 0
  %97 = vmatpush.bf16.msra.mxu0 0
  %98 = vmatpush.bf16.msra.mxu0 %v64
  %99 = vmatpush.bf16.msra.mxu0 %v45
  %100 = vmatmul.bf16.gmra.mxu0 %v54
  %v101 = vpop.f32.mrf.mxu0
  %v102 = vadd.f32 %v26, %v101
  %v103 = vpop.f32.mrf.mxu0
  %104 = vdwg.mxu0
  %105 = vst [vmem:[%s3] sm:$0xff] %v76
  %106 = vst [vmem:[%s3 + $0x8] sm:$0xff] %v89
  %107 = vst [vmem:[%s3 + $0x10] sm:$0xff] %v102
  %s108 = scalar_lea.vmem %s0, 36
  %v109 = vld [vmem:[%s108] sm:$0xff]
  %v110 = vld [vmem:[%s108 + $0x8] sm:$0xf]
  %v111 = vld [vmem:[%s108 + $0xc] sm:$0xff]
  %v112 = vld [vmem:[%s108 + $0x14] sm:$0xf]
  %v113 = vld [vmem:[%s108 + $0x18] sm:$0x33]
  %v114 = vld [vmem:[%s108 + $0x20] sm:$0x3]
  %v121 = vunpack.c.l.b16 %v109
  %v122 = vunpack.c.h.b16 %v109
  %v123 = vunpack.c.l.b16 %v110
  %v124 = vunpack.c.l.b16 %v111
  %v125 = vunpack.c.h.b16 %v111
  %v126 = vunpack.c.l.b16 %v112
  %v127 = vunpack.c.l.b16 %v113
  %v128 = vunpack.c.h.b16 %v113
  %v129 = vunpack.c.l.b16 %v114
  %v130 = vpack.c.b16 %v124, %v121
  %v131 = vpack.c.b16 %v125, %v122
  %v132 = vpack.c.b16 %v126, %v123
  %v133 = vpack.c.b16 %v127, %v127
  %v134 = vpack.c.b16 %v128, %v128
  %v135 = vpack.c.b16 %v129, %v129
  %v140 = vsel %vm56, %v133, 0
  %v143 = vsel %vm56, %v134, 0
  %v146 = vsel %vm56, %v135, 0
  %148 = vmatpush.bf16.msra.mxu0 0
  %149 = vmatpush.bf16.msra.mxu0 0
  %150 = vmatpush.bf16.msra.mxu0 0
  %151 = vmatpush.bf16.msra.mxu0 0
  %152 = vmatpush.bf16.msra.mxu0 0
  %153 = vmatpush.bf16.msra.mxu0 0
  %154 = vmatpush.bf16.msra.mxu0 %v140
  %155 = vmatpush.bf16.msra.mxu0 %v130
  %156 = vmatmul.bf16.gmra.mxu0 %v54
  %v157 = vpop.f32.mrf.mxu0
  %v158 = vadd.f32 %v26, %v157
  %v159 = vpop.f32.mrf.mxu0
  %160 = vdwg.mxu0
  %161 = vmatpush.bf16.msra.mxu0 0
  %162 = vmatpush.bf16.msra.mxu0 0
  %163 = vmatpush.bf16.msra.mxu0 0
  %164 = vmatpush.bf16.msra.mxu0 0
  %165 = vmatpush.bf16.msra.mxu0 0
  %166 = vmatpush.bf16.msra.mxu0 0
  %167 = vmatpush.bf16.msra.mxu0 %v143
  %168 = vmatpush.bf16.msra.mxu0 %v131
  %169 = vmatmul.bf16.gmra.mxu0 %v54
  %v170 = vpop.f32.mrf.mxu0
  %v171 = vadd.f32 %v26, %v170
  %v172 = vpop.f32.mrf.mxu0
  %173 = vdwg.mxu0
  %174 = vmatpush.bf16.msra.mxu0 0
  %175 = vmatpush.bf16.msra.mxu0 0
  %176 = vmatpush.bf16.msra.mxu0 0
  %177 = vmatpush.bf16.msra.mxu0 0
  %178 = vmatpush.bf16.msra.mxu0 0
  %179 = vmatpush.bf16.msra.mxu0 0
  %180 = vmatpush.bf16.msra.mxu0 %v146
  %181 = vmatpush.bf16.msra.mxu0 %v132
  %182 = vmatmul.bf16.gmra.mxu0 %v54
  %v183 = vpop.f32.mrf.mxu0
  %v184 = vadd.f32 %v26, %v183
  %v185 = vpop.f32.mrf.mxu0
  %186 = vdwg.mxu0
  %s187 = scalar_lea.vmem %s3, 24
  %188 = vst [vmem:[%s187] sm:$0xff] %v158
  %189 = vst [vmem:[%s187 + $0x8] sm:$0xff] %v171
  %190 = vst [vmem:[%s187 + $0x10] sm:$0xff] %v184
  // Predicated region
  $region14: #{mask_conv2d_forward.1} parent=0 // pred_check
    _
  $region15: #{mask_conv2d_forward.1} parent=0 // pred_check_branch
    %192 = sbr.rel (0) target = $region17
  $region16: #{mask_conv2d_forward.1} parent=0 // pred_region
    _
  $region17: #{mask_conv2d_forward.1} parent=0 // pred_fallthru
    _
  // Predicated region
  $region18: #{mask_conv2d_forward.1} parent=0 // pred_check
    _
  $region19: #{mask_conv2d_forward.1} parent=0 // pred_check_branch
    %194 = sbr.rel (0) target = $region21
  $region20: #{mask_conv2d_forward.1} parent=0 // pred_region
    _
  $region21: #{mask_conv2d_forward.1} parent=0 // pred_fallthru
    _

</llo_original>
